<compile_context>
chip_gen: v5e
topology: v5e:2x2
jax: 0.10.0
libtpu: 0.0.40
codegen_flags: <defaults>
</compile_context>

<pallas_src>
import jax
import jax.numpy as jnp
from jax import lax
from jax.experimental import pallas as pl
from jax.experimental.pallas import tpu as pltpu

LN_EPS = 1e-5  # PyTorch nn.LayerNorm default


def _sgu_kernel(u_ref, v_ref, gamma_ref, beta_ref, w_ref, b_ref, o_ref, vhat_ref):
    """One (batch b, C_out tile co) grid step.

    u_ref:      (1, TCO, half)  gate-input tile
    v_ref:      (1, C,   half)  full-channel v tile (re-DMA'd only when b changes)
    gamma_ref:  (1, half)       LayerNorm scale
    beta_ref:   (1, half)       LayerNorm shift
    w_ref:      (TCO, C)        1x1-conv weight tile
    b_ref:      (TCO, 1)        1x1-conv bias tile
    o_ref:      (1, TCO, half)  output tile
    vhat_ref:   (C, half)       per-batch LayerNorm result (VMEM scratch)
    """
    co = pl.program_id(1)

    # LayerNorm over the lane dim, computed ONCE per batch element and kept
    # resident in VMEM scratch across the (innermost) C_out-tile axis.
    @pl.when(co == 0)
    def _():
        v = v_ref[0]                                                # (C, half) f32
        mean = jnp.mean(v, axis=-1, keepdims=True)                  # (C, 1)
        centered = v - mean
        var = jnp.mean(centered * centered, axis=-1, keepdims=True)
        vhat = centered * lax.rsqrt(var + LN_EPS)
        vhat = vhat * gamma_ref[...] + beta_ref[...]                # (1, half) bcast
        vhat_ref[...] = vhat.astype(vhat_ref.dtype)

    # 1x1 Conv1d tile: (TCO, C) @ (C, half) on the MXU, f32 accumulate.
    v_proj = jnp.dot(w_ref[...], vhat_ref[...],
                     preferred_element_type=jnp.float32) + b_ref[...]

    # Gate: lane-dense epilogue on the (TCO, half) output tile.
    o_ref[0] = (u_ref[0] * v_proj).astype(o_ref.dtype)


def _pick_cout_tile(C: int) -> int:
    # Prefer 256 (v6e/v7x MXU is 2x256x256), then 128 (v5e MXU is 4x128x128).
    for t in (256, 128, 512, 64, 32, 16, 8):
        if t <= C and C % t == 0:
            return t
    return C  # tiny / irregular channel counts: single full-C tile


def spatial_gating_unit(x, gamma, beta, w, b, *, use_bf16_matmul=False):
    """x: (B, C, L) f32; gamma/beta: (L//2,); w: (C, C); b: (C,).

    Returns (B, C, L//2) f32, matching the PyTorch module's forward.
    """
    B, C, L = x.shape
    if L % 2 == 1:                     # PyTorch: x = x[:, :, :-1]
        x = x[:, :, :-1]
        L -= 1
    half = L // 2

    tco = _pick_cout_tile(C)
    nco = C // tco

    gamma2 = gamma.reshape(1, half).astype(jnp.float32)
    beta2 = beta.reshape(1, half).astype(jnp.float32)
    b2 = b.reshape(C, 1).astype(jnp.float32)
    w_in = w.astype(jnp.bfloat16) if use_bf16_matmul else w
    vhat_dtype = jnp.bfloat16 if use_bf16_matmul else jnp.float32

    # u / v as separate, lane-aligned DMA blocks. When half is a lane multiple
    # both halves are read straight out of x (zero extra HBM traffic); else
    # pre-split so every block's last dim equals its array's full last dim.
    if half % 128 == 0:
        u_arr, v_arr, v_last_block = x, x, 1
    else:
        u_arr, v_arr, v_last_block = x[:, :, :half], x[:, :, half:], 0

    u_spec = pl.BlockSpec((1, tco, half), lambda bi, co: (bi, co, 0))
    v_spec = pl.BlockSpec((1, C, half),
                          lambda bi, co: (bi, 0, v_last_block))

    # VMEM budget (double-buffered inputs/outputs + persistent vhat scratch).
    f32b = 4
    wtb = 2 if use_bf16_matmul else 4
    vmem_est = (
        2 * C * half * f32b            # v blocks
        + 2 * tco * half * f32b        # u blocks
        + 2 * tco * half * f32b        # output blocks
        + 2 * tco * C * wtb            # weight tiles
        + C * half * wtb               # vhat scratch
        + 2 * tco * 128 * f32b         # bias (lane-padded)
        + 4 * 8 * max(half, 128) * f32b  # gamma/beta (sublane-padded)
    )
    vmem_limit = int(min(max(vmem_est * 1.3, 16 * 1024 * 1024),
                         64 * 1024 * 1024))

    cost = pl.CostEstimate(
        flops=int(2 * B * C * C * half + 10 * B * C * half),
        transcendentals=int(B * C),                    # rsqrt per (b, channel)
        bytes_accessed=int(B * C * L * f32b + C * C * wtb
                           + B * C * half * f32b + (2 * half + 2 * C) * f32b),
    )

    return pl.pallas_call(
        _sgu_kernel,
        out_shape=jax.ShapeDtypeStruct((B, C, half), x.dtype),
        grid_spec=pltpu.PrefetchScalarGridSpec(
            num_scalar_prefetch=0,
            grid=(B, nco),
            in_specs=[
                u_spec,                                              # u tile
                v_spec,                                              # v (full C)
                pl.BlockSpec((1, half), lambda bi, co: (0, 0)),      # LN gamma
                pl.BlockSpec((1, half), lambda bi, co: (0, 0)),      # LN beta
                pl.BlockSpec((tco, C), lambda bi, co: (co, 0)),      # conv1x1 W tile
                pl.BlockSpec((tco, 1), lambda bi, co: (co, 0)),      # conv1x1 bias
            ],
            out_specs=pl.BlockSpec((1, tco, half), lambda bi, co: (bi, co, 0)),
            scratch_shapes=[pltpu.VMEM((C, half), vhat_dtype)],
        ),
        compiler_params=pltpu.CompilerParams(
            dimension_semantics=("parallel", "arbitrary"),
            vmem_limit_bytes=vmem_limit),
        cost_estimate=cost,
    )(u_arr, v_arr, gamma2, beta2, w_in, b2)


def reference(x, gamma, beta, w, b):
    """Pure-JAX reference mirroring the PyTorch forward."""
    if x.shape[-1] % 2 == 1:
        x = x[:, :, :-1]
    half = x.shape[-1] // 2
    u, v = x[:, :, :half], x[:, :, half:]
    mean = jnp.mean(v, axis=-1, keepdims=True)
    var = jnp.mean((v - mean) ** 2, axis=-1, keepdims=True)
    vhat = (v - mean) * lax.rsqrt(var + LN_EPS)
    vhat = vhat * gamma[None, None, :] + beta[None, None, :]
    v_proj = jnp.einsum("oc,bcl->bol", w, vhat) + b[None, :, None]
    return u * v_proj


if __name__ == "__main__":
    def check(B, d_ffn, seq_len, *, use_bf16_matmul=False, atol=1e-5):
        half = (seq_len - seq_len % 2) // 2
        key = jax.random.PRNGKey(0)
        kx, kw = jax.random.split(key)
        x = jax.random.normal(kx, (B, d_ffn, seq_len), dtype=jnp.float32)
        # Deterministic parameters per the module __init__:
        #   LayerNorm: gamma=1, beta=0 (PyTorch defaults)
        #   spatial_proj: weight ~ N(0, 1e-6), bias = 1.0
        gamma = jnp.ones((half,), dtype=jnp.float32)
        beta = jnp.zeros((half,), dtype=jnp.float32)
        w = 1e-6 * jax.random.normal(kw, (d_ffn, d_ffn), dtype=jnp.float32)
        b = jnp.ones((d_ffn,), dtype=jnp.float32)

        out = jax.block_until_ready(
            spatial_gating_unit(x, gamma, beta, w, b,
                                use_bf16_matmul=use_bf16_matmul))
        ref = reference(x, gamma, beta, w, b)
        assert out.shape == (B, d_ffn, half), out.shape
        err = float(jnp.max(jnp.abs(out - ref)))
        assert err <= atol, (
            f"max abs err {err} (B={B}, C={d_ffn}, L={seq_len}, "
            f"bf16={use_bf16_matmul})")

    # Tiny shape from the module example (exercises the wrapper-split path,
    # TCO == C, single C_out tile).
    check(2, 4, 16)
    # Moderate shape exercising the zero-copy shared-x lane-aligned u/v split
    # and C_out tiling with grid co > 1 (C=512 -> TCO=256, nco=2).
    check(2, 512, 256)
    # bf16 MXU fast path (f32 accumulate), looser tolerance.
    check(2, 512, 256, use_bf16_matmul=True, atol=1e-3)

    print("KERNEL_OK")
</pallas_src>

<mosaic_0001>
module attributes {stable_mosaic.version = 11 : i64} {
  func.func @_sgu_kernel(%arg0: i32, %arg1: i32, %arg2: memref<1x4x8xf32, #tpu.memory_space<vmem>>, %arg3: memref<1x4x8xf32, #tpu.memory_space<vmem>>, %arg4: memref<1x8xf32, #tpu.memory_space<vmem>>, %arg5: memref<1x8xf32, #tpu.memory_space<vmem>>, %arg6: memref<4x4xf32, #tpu.memory_space<vmem>>, %arg7: memref<4x1xf32, #tpu.memory_space<vmem>>, %arg8: memref<1x4x8xf32, #tpu.memory_space<vmem>>, %arg9: memref<4x8xf32, #tpu.memory_space<vmem>>) attributes {dimension_semantics = [#tpu.dimension_semantics<parallel>, #tpu.dimension_semantics<arbitrary>], iteration_bounds = array<i64: 2, 1>, scalar_prefetch = 0 : i64, scratch_operands = 1 : i64, tpu.core_type = #tpu.core_type<tc>, window_params = [{transform_indices = @transform_0, window_bounds = array<i64: 1, 4, 8>}, {transform_indices = @transform_1, window_bounds = array<i64: 1, 4, 8>}, {pipeline_mode = #tpu.pipeline_mode<synchronous>, transform_indices = @transform_2, window_bounds = array<i64: 1, 8>}, {pipeline_mode = #tpu.pipeline_mode<synchronous>, transform_indices = @transform_3, window_bounds = array<i64: 1, 8>}, {transform_indices = @transform_4, window_bounds = array<i64: 4, 4>}, {transform_indices = @transform_5, window_bounds = array<i64: 4, 1>}, {transform_indices = @transform_6, window_bounds = array<i64: 1, 4, 8>}]} {
    %c0_i32 = arith.constant 0 : i32
    %0 = arith.cmpi eq, %arg1, %c0_i32 : i32
    %1 = arith.extui %0 : i1 to i32
    %c0_i32_0 = arith.constant 0 : i32
    %2 = arith.cmpi ne, %1, %c0_i32_0 : i32
    scf.if %2 {
      %c0_12 = arith.constant 0 : index
      %c0_13 = arith.constant 0 : index
      %c0_14 = arith.constant 0 : index
      %15 = vector.load %arg3[%c0_12, %c0_13, %c0_14] : memref<1x4x8xf32, #tpu.memory_space<vmem>>, vector<1x4x8xf32>
      %16 = vector.shape_cast %15 : vector<1x4x8xf32> to vector<4x8xf32>
      %cst_15 = arith.constant dense<0.000000e+00> : vector<4xf32>
      %17 = vector.multi_reduction <add>, %16, %cst_15 [1] : vector<4x8xf32> to vector<4xf32>
      %18 = vector.shape_cast %17 : vector<4xf32> to vector<4x1xf32>
      %cst_16 = arith.constant 8.000000e+00 : f32
      %19 = vector.broadcast %cst_16 : f32 to vector<4x1xf32>
      %20 = arith.divf %18, %19 : vector<4x1xf32>
      %21 = vector.broadcast %20 : vector<4x1xf32> to vector<4x8xf32>
      %22 = arith.subf %16, %21 : vector<4x8xf32>
      %23 = arith.mulf %22, %22 : vector<4x8xf32>
      %cst_17 = arith.constant dense<0.000000e+00> : vector<4xf32>
      %24 = vector.multi_reduction <add>, %23, %cst_17 [1] : vector<4x8xf32> to vector<4xf32>
      %25 = vector.shape_cast %24 : vector<4xf32> to vector<4x1xf32>
      %cst_18 = arith.constant 8.000000e+00 : f32
      %26 = vector.broadcast %cst_18 : f32 to vector<4x1xf32>
      %27 = arith.divf %25, %26 : vector<4x1xf32>
      %cst_19 = arith.constant 9.99999974E-6 : f32
      %28 = vector.broadcast %cst_19 : f32 to vector<4x1xf32>
      %29 = arith.addf %27, %28 : vector<4x1xf32>
      %30 = math.rsqrt %29 : vector<4x1xf32>
      %31 = vector.broadcast %30 : vector<4x1xf32> to vector<4x8xf32>
      %32 = arith.mulf %22, %31 : vector<4x8xf32>
      %c0_20 = arith.constant 0 : index
      %c0_21 = arith.constant 0 : index
      %33 = vector.load %arg4[%c0_20, %c0_21] : memref<1x8xf32, #tpu.memory_space<vmem>>, vector<1x8xf32>
      %34 = vector.broadcast %33 : vector<1x8xf32> to vector<4x8xf32>
      %35 = arith.mulf %32, %34 : vector<4x8xf32>
      %c0_22 = arith.constant 0 : index
      %c0_23 = arith.constant 0 : index
      %36 = vector.load %arg5[%c0_22, %c0_23] : memref<1x8xf32, #tpu.memory_space<vmem>>, vector<1x8xf32>
      %37 = vector.broadcast %36 : vector<1x8xf32> to vector<4x8xf32>
      %38 = arith.addf %35, %37 : vector<4x8xf32>
      %c0_24 = arith.constant 0 : index
      %c0_25 = arith.constant 0 : index
      %39 = vector.load %arg9[%c0_24, %c0_25] : memref<4x8xf32, #tpu.memory_space<vmem>>, vector<4x8xf32>
      tpu.vector_store %arg9[%c0_24, %c0_25], %38 {strides = array<i32>} : memref<4x8xf32, #tpu.memory_space<vmem>>, vector<4x8xf32>,
    } else {
    }
    %c0 = arith.constant 0 : index
    %c0_1 = arith.constant 0 : index
    %3 = vector.load %arg6[%c0, %c0_1] : memref<4x4xf32, #tpu.memory_space<vmem>>, vector<4x4xf32>
    %c0_2 = arith.constant 0 : index
    %c0_3 = arith.constant 0 : index
    %4 = vector.load %arg9[%c0_2, %c0_3] : memref<4x8xf32, #tpu.memory_space<vmem>>, vector<4x8xf32>
    %cst = arith.constant dense<0.000000e+00> : vector<4x8xf32>
    %5 = tpu.matmul %3, %4, %cst {dimension_numbers = #tpu.dot_dimension_numbers<[1], [0], [0], [1], [0, 0, 1, 1], [], []>} : vector<4x4xf32>, vector<4x8xf32>, vector<4x8xf32> -> vector<4x8xf32>
    %c0_4 = arith.constant 0 : index
    %c0_5 = arith.constant 0 : index
    %6 = vector.load %arg7[%c0_4, %c0_5] : memref<4x1xf32, #tpu.memory_space<vmem>>, vector<4x1xf32>
    %7 = vector.broadcast %6 : vector<4x1xf32> to vector<4x8xf32>
    %8 = arith.addf %5, %7 : vector<4x8xf32>
    %c0_6 = arith.constant 0 : index
    %c0_7 = arith.constant 0 : index
    %c0_8 = arith.constant 0 : index
    %9 = vector.load %arg2[%c0_6, %c0_7, %c0_8] : memref<1x4x8xf32, #tpu.memory_space<vmem>>, vector<1x4x8xf32>
    %10 = vector.shape_cast %9 : vector<1x4x8xf32> to vector<4x8xf32>
    %11 = arith.mulf %10, %8 : vector<4x8xf32>
    %c0_9 = arith.constant 0 : index
    %c0_10 = arith.constant 0 : index
    %c0_11 = arith.constant 0 : index
    %12 = vector.load %arg8[%c0_9, %c0_10, %c0_11] : memref<1x4x8xf32, #tpu.memory_space<vmem>>, vector<1x4x8xf32>
    %13 = vector.shape_cast %12 : vector<1x4x8xf32> to vector<4x8xf32>
    %14 = vector.shape_cast %11 : vector<4x8xf32> to vector<1x4x8xf32>
    tpu.vector_store %arg8[%c0_9, %c0_10, %c0_11], %14 {strides = array<i32>} : memref<1x4x8xf32, #tpu.memory_space<vmem>>, vector<1x4x8xf32>,
    return
  }
  func.func @transform_0(%arg0: i32, %arg1: i32) -> (i32, i32, i32) {
    %c0_i32 = arith.constant 0 : i32
    %c0_i32_0 = arith.constant 0 : i32
    return %arg0, %arg1, %c0_i32 : i32, i32, i32
  }
  func.func @transform_1(%arg0: i32, %arg1: i32) -> (i32, i32, i32) {
    %c0_i32 = arith.constant 0 : i32
    %c0_i32_0 = arith.constant 0 : i32
    %c0_i32_1 = arith.constant 0 : i32
    return %arg0, %c0_i32, %c0_i32_0 : i32, i32, i32
  }
  func.func @transform_2(%arg0: i32, %arg1: i32) -> (i32, i32) {
    %c0_i32 = arith.constant 0 : i32
    %c0_i32_0 = arith.constant 0 : i32
    %c0_i32_1 = arith.constant 0 : i32
    return %c0_i32, %c0_i32_0 : i32, i32
  }
  func.func @transform_3(%arg0: i32, %arg1: i32) -> (i32, i32) {
    %c0_i32 = arith.constant 0 : i32
    %c0_i32_0 = arith.constant 0 : i32
    %c0_i32_1 = arith.constant 0 : i32
    return %c0_i32, %c0_i32_0 : i32, i32
  }
  func.func @transform_4(%arg0: i32, %arg1: i32) -> (i32, i32) {
    %c0_i32 = arith.constant 0 : i32
    %c0_i32_0 = arith.constant 0 : i32
    return %arg1, %c0_i32 : i32, i32
  }
  func.func @transform_5(%arg0: i32, %arg1: i32) -> (i32, i32) {
    %c0_i32 = arith.constant 0 : i32
    %c0_i32_0 = arith.constant 0 : i32
    return %arg1, %c0_i32 : i32, i32
  }
  func.func @transform_6(%arg0: i32, %arg1: i32) -> (i32, i32, i32) {
    %c0_i32 = arith.constant 0 : i32
    %c0_i32_0 = arith.constant 0 : i32
    return %arg0, %arg1, %c0_i32 : i32, i32, i32
  }
}

</mosaic_0001>

<llo_original>
// kernel: tpu_custom_call.1
$region0: #{tpu_custom_call.1}
  #allocation0 [shape = 'u32[]', space=smem, size = 0x4, offset = 0x4, fixed_abs, tag = 'smem constant byte address 0x4 - core index']
  #allocation1 [shape = 'u32[72,128]{1,0:T(1,128)}', space=vmem, size = 0x9000, scoped, tag = 'internal scratch']
  #allocation2 [shape = 'f32[4,8]{1,0:T(4,128)}', space=vmem, size = 0x800, scoped, tag = 'scratch operand']
  %s0 = inlined_call_operand.hbm [shape: f32[2,4,8], index: 0, kind: input, shape index: {}]
  %s1 = inlined_call_operand.hbm [shape: f32[2,4,8], index: 1, kind: input, shape index: {}]
  %s2 = inlined_call_operand.vmem [shape: f32[1,8], index: 2, kind: input, shape index: {}]
  %s3 = inlined_call_operand.vmem [shape: f32[1,8], index: 3, kind: input, shape index: {}]
  %s4 = inlined_call_operand.vmem [shape: f32[4,4], index: 4, kind: input, shape index: {}]
  %s5 = inlined_call_operand.vmem [shape: f32[4,1], index: 5, kind: input, shape index: {}]
  %s6 = inlined_call_operand.hbm [shape: f32[2,4,8], index: 6, kind: output, shape index: {}]
  %s7 = sld [smem:[#allocation0]]
  $region69: #{tpu_custom_call.1} parent=0
    _
  %s9 = ssub.s32 1, %s7
  %s10 = scalar_select 0, %s9, %s7
  $region1: #{tpu_custom_call.1} parent=0
    #allocation3 [shape = 'u8[4096]{0}', space=vmem, size = 0x1000, scoped, tag = 'input window, operand 0']
    #allocation4 [shape = 's32[2]{0}', space=sflag, size = 0x8, scoped, tag = 'scoped memory for tpu_custom_call.1']
    #allocation5 [shape = 's32[2]{0}', space=sflag, size = 0x8, scoped, tag = 'scoped memory for tpu_custom_call.1']
    #allocation6 [shape = 'u8[4096]{0}', space=vmem, size = 0x1000, scoped, tag = 'input window, operand 1']
    #allocation7 [shape = 's32[2]{0}', space=sflag, size = 0x8, scoped, tag = 'scoped memory for tpu_custom_call.1']
    #allocation8 [shape = 'u8[4096]{0}', space=vmem, size = 0x1000, scoped, tag = 'output window, operand 0']
    %11 = vsyncpa [#allocation4], 0
    %s12 = scalar_lea.sflag [#allocation4], 1
    %13 = vsyncpa %s12, 0
    %14 = vsyncpa [#allocation7], 0
    %s15 = scalar_lea.sflag [#allocation7], 1
    %16 = vsyncpa %s15, 0
    %17 = vsyncpa [#allocation5], 0
    %s18 = scalar_lea.sflag [#allocation5], 1
    %19 = vsyncpa %s18, 0
    loop: start=0, step=1, limit=4
    $region2: #{tpu_custom_call.1} parent=1 // loop_pre_header
      _
    $region3: #{tpu_custom_call.1} parent=1 // loop_header
      %s21 = sphi 0, %s25
      %p22 = scmp.ge.s32.totalorder %s21, 4
      %s28 = sphi 0, %s40
      %s29 = sphi 0, %s36
      %s30 = sphi 0, %s28
      %s31 = sphi 0, %s29
      %s32 = sphi 0, %s30
      %s33 = sphi 0, %s31
      %s45 = sphi 0, %s47
      %s48 = sphi 0, %s45
      %s49 = sphi 0, %s48
      %s65 = sphi 0, %s49
      %s71 = sphi 0, %s73
      %s74 = sphi 0, %s71
      %s75 = sphi 0, %s74
      %s91 = sphi 0, %s75
      %s95 = sphi 0, %s95
      %s97 = sphi 0, %s95
      %s98 = sphi 0, %s97
      %s112 = sphi 0, %s98
      %s116 = sphi 0, %s116
      %s118 = sphi 0, %s116
      %s119 = sphi 0, %s118
      %s133 = sphi 0, %s119
      %s139 = sphi 0, %s141
      %s142 = sphi 0, %s139
      %s143 = sphi 0, %s142
      %s159 = sphi 0, %s143
      %s165 = sphi 0, %s167
      %s168 = sphi 0, %s165
      %s169 = sphi 0, %s168
      %s185 = sphi 0, %s169
      %s193 = sphi 0, %s195
      %s196 = sphi 0, %s193
      %s197 = sphi 0, %s196
      %s213 = sphi 0, %s197
    $region4: #{tpu_custom_call.1} parent=1 // loop_header_branch
      %24 = sbr.rel (%p22) target = $region8
    $region5: #{tpu_custom_call.1} parent=1 // loop_body
      %s26 = ssub.s32 %s21, 1
      %s27 = ssub.s32 %s21, 2
      %s34 = sadd.s32 1, %s29
      %p35 = scmp.ge.s32.totalorder %s34, 1
      %s36 = scalar_select %p35, 0, %s34
      %s37 = sadd.s32 1, %s28
      %s38 = scalar_select %p35, %s37, %s28
      %p39 = scmp.ge.s32.totalorder %s38, 2
      %s40 = scalar_select %p39, 0, %s38
      %s41 = ssub.s32 %s28, %s40
      %s42 = ssub.s32 %s29, %s36
      %s43 = sor.u32 %s41, %s42
      %p44 = scmp.eq.s32.totalorder %s43, 0
      %s46 = sadd.s32 %s45, 1
      %s47 = scalar_select %p44, %s45, %s46
      %p50 = pneg %p44
      %p51 = scmp.eq.s32.totalorder %s21, 1
      %p52 = por %p50, %p51
      %p53 = scmp.ne.s32.totalorder %s45, %s48
      %p54 = scmp.eq.s32.totalorder %s21, 0
      %p55 = por %p53, %p54
      %p56 = scmp.ne.s32.totalorder %s45, %s48
      %p57 = scmp.eq.s32.totalorder %s26, 1
      %p58 = por %p56, %p57
      %p59 = scmp.ne.s32.totalorder %s48, %s49
      %p60 = scmp.eq.s32.totalorder %s26, 0
      %p61 = por %p59, %p60
      %p62 = scmp.ne.s32.totalorder %s48, %s49
      %p63 = scmp.eq.s32.totalorder %s27, 1
      %p64 = por %p62, %p63
      %p66 = scmp.ne.s32.totalorder %s49, %s65
      %p67 = scmp.eq.s32.totalorder %s27, 0
      %p68 = por %p66, %p67
      %s69 = ssub.s32 %s28, %s40
      %p70 = scmp.eq.s32.totalorder %s69, 0
      %s72 = sadd.s32 %s71, 1
      %s73 = scalar_select %p70, %s71, %s72
      %p76 = pneg %p70
      %p77 = scmp.eq.s32.totalorder %s21, 1
      %p78 = por %p76, %p77
      %p79 = scmp.ne.s32.totalorder %s71, %s74
      %p80 = scmp.eq.s32.totalorder %s21, 0
      %p81 = por %p79, %p80
      %p82 = scmp.ne.s32.totalorder %s71, %s74
      %p83 = scmp.eq.s32.totalorder %s26, 1
      %p84 = por %p82, %p83
      %p85 = scmp.ne.s32.totalorder %s74, %s75
      %p86 = scmp.eq.s32.totalorder %s26, 0
      %p87 = por %p85, %p86
      %p88 = scmp.ne.s32.totalorder %s74, %s75
      %p89 = scmp.eq.s32.totalorder %s27, 1
      %p90 = por %p88, %p89
      %p92 = scmp.ne.s32.totalorder %s75, %s91
      %p93 = scmp.eq.s32.totalorder %s27, 0
      %p94 = por %p92, %p93
      %s96 = sadd.s32 %s95, 1
      %p99 = scmp.eq.s32.totalorder %s21, 1
      %p100 = scmp.ne.s32.totalorder %s95, %s97
      %p101 = scmp.eq.s32.totalorder %s21, 0
      %p102 = por %p100, %p101
      %p103 = scmp.ne.s32.totalorder %s95, %s97
      %p104 = scmp.eq.s32.totalorder %s26, 1
      %p105 = por %p103, %p104
      %p106 = scmp.ne.s32.totalorder %s97, %s98
      %p107 = scmp.eq.s32.totalorder %s26, 0
      %p108 = por %p106, %p107
      %p109 = scmp.ne.s32.totalorder %s97, %s98
      %p110 = scmp.eq.s32.totalorder %s27, 1
      %p111 = por %p109, %p110
      %p113 = scmp.ne.s32.totalorder %s98, %s112
      %p114 = scmp.eq.s32.totalorder %s27, 0
      %p115 = por %p113, %p114
      %s117 = sadd.s32 %s116, 1
      %p120 = scmp.eq.s32.totalorder %s21, 1
      %p121 = scmp.ne.s32.totalorder %s116, %s118
      %p122 = scmp.eq.s32.totalorder %s21, 0
      %p123 = por %p121, %p122
      %p124 = scmp.ne.s32.totalorder %s116, %s118
      %p125 = scmp.eq.s32.totalorder %s26, 1
      %p126 = por %p124, %p125
      %p127 = scmp.ne.s32.totalorder %s118, %s119
      %p128 = scmp.eq.s32.totalorder %s26, 0
      %p129 = por %p127, %p128
      %p130 = scmp.ne.s32.totalorder %s118, %s119
      %p131 = scmp.eq.s32.totalorder %s27, 1
      %p132 = por %p130, %p131
      %p134 = scmp.ne.s32.totalorder %s119, %s133
      %p135 = scmp.eq.s32.totalorder %s27, 0
      %p136 = por %p134, %p135
      %s137 = ssub.s32 %s29, %s36
      %p138 = scmp.eq.s32.totalorder %s137, 0
      %s140 = sadd.s32 %s139, 1
      %s141 = scalar_select %p138, %s139, %s140
      %p144 = pneg %p138
      %p145 = scmp.eq.s32.totalorder %s21, 1
      %p146 = por %p144, %p145
      %p147 = scmp.ne.s32.totalorder %s139, %s142
      %p148 = scmp.eq.s32.totalorder %s21, 0
      %p149 = por %p147, %p148
      %p150 = scmp.ne.s32.totalorder %s139, %s142
      %p151 = scmp.eq.s32.totalorder %s26, 1
      %p152 = por %p150, %p151
      %p153 = scmp.ne.s32.totalorder %s142, %s143
      %p154 = scmp.eq.s32.totalorder %s26, 0
      %p155 = por %p153, %p154
      %p156 = scmp.ne.s32.totalorder %s142, %s143
      %p157 = scmp.eq.s32.totalorder %s27, 1
      %p158 = por %p156, %p157
      %p160 = scmp.ne.s32.totalorder %s143, %s159
      %p161 = scmp.eq.s32.totalorder %s27, 0
      %p162 = por %p160, %p161
      %s163 = ssub.s32 %s29, %s36
      %p164 = scmp.eq.s32.totalorder %s163, 0
      %s166 = sadd.s32 %s165, 1
      %s167 = scalar_select %p164, %s165, %s166
      %p170 = pneg %p164
      %p171 = scmp.eq.s32.totalorder %s21, 1
      %p172 = por %p170, %p171
      %p173 = scmp.ne.s32.totalorder %s165, %s168
      %p174 = scmp.eq.s32.totalorder %s21, 0
      %p175 = por %p173, %p174
      %p176 = scmp.ne.s32.totalorder %s165, %s168
      %p177 = scmp.eq.s32.totalorder %s26, 1
      %p178 = por %p176, %p177
      %p179 = scmp.ne.s32.totalorder %s168, %s169
      %p180 = scmp.eq.s32.totalorder %s26, 0
      %p181 = por %p179, %p180
      %p182 = scmp.ne.s32.totalorder %s168, %s169
      %p183 = scmp.eq.s32.totalorder %s27, 1
      %p184 = por %p182, %p183
      %p186 = scmp.ne.s32.totalorder %s169, %s185
      %p187 = scmp.eq.s32.totalorder %s27, 0
      %p188 = por %p186, %p187
      %s189 = ssub.s32 %s28, %s40
      %s190 = ssub.s32 %s29, %s36
      %s191 = sor.u32 %s189, %s190
      %p192 = scmp.eq.s32.totalorder %s191, 0
      %s194 = sadd.s32 %s193, 1
      %s195 = scalar_select %p192, %s193, %s194
      %p198 = pneg %p192
      %p199 = scmp.eq.s32.totalorder %s21, 1
      %p200 = por %p198, %p199
      %p201 = scmp.ne.s32.totalorder %s193, %s196
      %p202 = scmp.eq.s32.totalorder %s21, 0
      %p203 = por %p201, %p202
      %p204 = scmp.ne.s32.totalorder %s193, %s196
      %p205 = scmp.eq.s32.totalorder %s26, 1
      %p206 = por %p204, %p205
      %p207 = scmp.ne.s32.totalorder %s196, %s197
      %p208 = scmp.eq.s32.totalorder %s26, 0
      %p209 = por %p207, %p208
      %p210 = scmp.ne.s32.totalorder %s196, %s197
      %p211 = scmp.eq.s32.totalorder %s27, 1
      %p212 = por %p210, %p211
      %p214 = scmp.ne.s32.totalorder %s197, %s213
      %p215 = scmp.eq.s32.totalorder %s27, 0
      %p216 = por %p214, %p215
      %p217 = scmp.le.s32.totalorder 1, %s21
      %p218 = scmp.lt.s32.totalorder %s21, 3
      %p219 = pnand %p217, %p218
      %p220 = pneg %p219
      // Predicated region
      $region9: #{tpu_custom_call.1} parent=5 // pred_check
        _
      $region10: #{tpu_custom_call.1} parent=5 // pred_check_branch
        %222 = sbr.rel (%p219) target = $region12
      $region11: #{tpu_custom_call.1} parent=5 // pred_region
        %s223 = ssub.s32 %s21, 1
        // Predicated region
        $region13: #{tpu_custom_call.1} parent=11 // pred_check
          %p224 = pneg %p108
        $region14: #{tpu_custom_call.1} parent=11 // pred_check_branch
          %226 = sbr.rel (%p224) target = $region16
        $region15: #{tpu_custom_call.1} parent=11 // pred_region
          _
        $region16: #{tpu_custom_call.1} parent=11 // pred_fallthru
          _
        // Predicated region
        $region17: #{tpu_custom_call.1} parent=11 // pred_check
          %p227 = pneg %p129
        $region18: #{tpu_custom_call.1} parent=11 // pred_check_branch
          %229 = sbr.rel (%p227) target = $region20
        $region19: #{tpu_custom_call.1} parent=11 // pred_region
          _
        $region20: #{tpu_custom_call.1} parent=11 // pred_fallthru
          _
        // Predicated region
        $region21: #{tpu_custom_call.1} parent=11 // pred_check
          %p230 = pneg %p155
        $region22: #{tpu_custom_call.1} parent=11 // pred_check_branch
          %232 = sbr.rel (%p230) target = $region24
        $region23: #{tpu_custom_call.1} parent=11 // pred_region
          %p233 = scmp.lt.s32.totalorder %s31, 0
          %s234 = scalar_select %p233, %s31, 0
          %s235 = smul.addr %s234, 4
          %s236 = scalar_lea.vmem %s4, %s235
        $region24: #{tpu_custom_call.1} parent=11 // pred_fallthru
          _
        // Predicated region
        $region25: #{tpu_custom_call.1} parent=11 // pred_check
          %p237 = pneg %p181
        $region26: #{tpu_custom_call.1} parent=11 // pred_check_branch
          %239 = sbr.rel (%p237) target = $region28
        $region27: #{tpu_custom_call.1} parent=11 // pred_region
          %p240 = scmp.lt.s32.totalorder %s31, 0
          %s241 = scalar_select %p240, %s31, 0
          %s242 = smul.addr %s241, 4
          %s243 = scalar_lea.vmem %s5, %s242
        $region28: #{tpu_custom_call.1} parent=11 // pred_fallthru
          _
      $region12: #{tpu_custom_call.1} parent=5 // pred_fallthru
        _
      %p244 = scmp.lt.s32.totalorder %s21, 2
      // Predicated region
      $region29: #{tpu_custom_call.1} parent=5 // pred_check
        %p245 = pneg %p244
      $region30: #{tpu_custom_call.1} parent=5 // pred_check_branch
        %247 = sbr.rel (%p245) target = $region32
      $region31: #{tpu_custom_call.1} parent=5 // pred_region
        // Predicated region
        $region33: #{tpu_custom_call.1} parent=31 // pred_check
          %p248 = pneg %p55
        $region34: #{tpu_custom_call.1} parent=31 // pred_check_branch
          %250 = sbr.rel (%p248) target = $region36
        $region35: #{tpu_custom_call.1} parent=31 // pred_region
          %s251 = sand.u32 %s45, 1
          %s252 = scalar_lea.sflag [#allocation4], %s251
          %s253 = sand.u32 %s45, 1
          %s254 = smul.addr %s253, 4
          %s255 = scalar_lea.vmem [#allocation3], %s254
          %257 = vsyncadd %s252, 0
          %s258 = sadd.s32 %s29, %s28
          %s259 = smul.addr %s258, 4
          %s260 = scalar_lea.hbm %s0, %s259
          %s262 = sshll.u32 %s260, 4
          %s263 = int_to_ptr.hbm [resolvable:$true] %s262
          %s264 = sshll.u32 %s255, 4
          %s265 = int_to_ptr.vmem [resolvable:$true] %s264
          %267 = dma.hbm_to_vmem [thread:$0]  %s263, 64, %s265, %s252
        $region36: #{tpu_custom_call.1} parent=31 // pred_fallthru
          _
        // Predicated region
        $region37: #{tpu_custom_call.1} parent=31 // pred_check
          %p268 = pneg %p81
        $region38: #{tpu_custom_call.1} parent=31 // pred_check_branch
          %270 = sbr.rel (%p268) target = $region40
        $region39: #{tpu_custom_call.1} parent=31 // pred_region
          %s271 = sand.u32 %s71, 1
          %s272 = scalar_lea.sflag [#allocation7], %s271
          %s273 = sand.u32 %s71, 1
          %s274 = smul.addr %s273, 4
          %s275 = scalar_lea.vmem [#allocation6], %s274
          %277 = vsyncadd %s272, 0
          %s278 = smul.addr %s28, 4
          %s279 = scalar_lea.hbm %s1, %s278
          %s281 = sshll.u32 %s279, 4
          %s282 = int_to_ptr.hbm [resolvable:$true] %s281
          %s283 = sshll.u32 %s275, 4
          %s284 = int_to_ptr.vmem [resolvable:$true] %s283
          %286 = dma.hbm_to_vmem [thread:$0]  %s282, 64, %s284, %s272
        $region40: #{tpu_custom_call.1} parent=31 // pred_fallthru
          _
      $region32: #{tpu_custom_call.1} parent=5 // pred_fallthru
        _
      %p287 = scmp.le.s32.totalorder 1, %s21
      %p288 = scmp.lt.s32.totalorder %s21, 3
      %p289 = pnand %p287, %p288
      %p290 = pneg %p289
      // Predicated region
      $region41: #{tpu_custom_call.1} parent=5 // pred_check
        _
      $region42: #{tpu_custom_call.1} parent=5 // pred_check_branch
        %292 = sbr.rel (%p289) target = $region44
      $region43: #{tpu_custom_call.1} parent=5 // pred_region
        %s293 = ssub.s32 %s21, 1
        %s294 = sand.u32 %s48, 1
        %s295 = scalar_lea.sflag [#allocation4], %s294
        %s296 = sand.u32 %s48, 1
        %s297 = smul.addr %s296, 4
        %s298 = scalar_lea.vmem [#allocation3], %s297
        // Predicated region
        $region45: #{tpu_custom_call.1} parent=43 // pred_check
          %p299 = pneg %p61
        $region46: #{tpu_custom_call.1} parent=43 // pred_check_branch
          %301 = sbr.rel (%p299) target = $region48
        $region47: #{tpu_custom_call.1} parent=43 // pred_region
          %303 = dma.done %s295, 64
        $region48: #{tpu_custom_call.1} parent=43 // pred_fallthru
          _
        %s304 = sand.u32 %s74, 1
        %s305 = scalar_lea.sflag [#allocation7], %s304
        %s306 = sand.u32 %s74, 1
        %s307 = smul.addr %s306, 4
        %s308 = scalar_lea.vmem [#allocation6], %s307
        // Predicated region
        $region49: #{tpu_custom_call.1} parent=43 // pred_check
          %p309 = pneg %p87
        $region50: #{tpu_custom_call.1} parent=43 // pred_check_branch
          %311 = sbr.rel (%p309) target = $region52
        $region51: #{tpu_custom_call.1} parent=43 // pred_region
          %313 = dma.done %s305, 64
        $region52: #{tpu_custom_call.1} parent=43 // pred_fallthru
          _
        %s314 = sand.u32 %s48, 1
        %s315 = scalar_lea.sflag [#allocation4], %s314
        %s316 = sand.u32 %s48, 1
        %s317 = smul.addr %s316, 4
        %s318 = scalar_lea.vmem [#allocation3], %s317
        %p319 = pneg %p61
        %p320 = pneg %p58
        %s321 = sand.u32 %s74, 1
        %s322 = scalar_lea.sflag [#allocation7], %s321
        %s323 = sand.u32 %s74, 1
        %s324 = smul.addr %s323, 4
        %s325 = scalar_lea.vmem [#allocation6], %s324
        %p326 = pneg %p87
        %p327 = pneg %p84
        %p328 = pneg %p108
        %p329 = pneg %p105
        %p330 = pneg %p129
        %p331 = pneg %p126
        %p332 = scmp.lt.s32.totalorder %s31, 0
        %s333 = scalar_select %p332, %s31, 0
        %s334 = smul.addr %s333, 4
        %s335 = scalar_lea.vmem %s4, %s334
        %p336 = pneg %p155
        %p337 = pneg %p152
        %p338 = scmp.lt.s32.totalorder %s31, 0
        %s339 = scalar_select %p338, %s31, 0
        %s340 = smul.addr %s339, 4
        %s341 = scalar_lea.vmem %s5, %s340
        %p342 = pneg %p181
        %p343 = pneg %p178
        %p344 = pneg %p209
        %p345 = pneg %p206
        %s346 = sand.u32 %s196, 1
        %s347 = scalar_lea.sflag [#allocation5], %s346
        %s348 = sand.u32 %s196, 1
        %s349 = smul.addr %s348, 4
        %s350 = scalar_lea.vmem [#allocation8], %s349
        %p351 = scmp.lt.s32.totalorder %s31, 0
        %s352 = scalar_select %p351, %s31, 0
        %s353 = smul.addr %s352, 4
        %s354 = scalar_lea.vmem %s4, %s353
        %p355 = scmp.lt.s32.totalorder %s31, 0
        %s356 = scalar_select %p355, %s31, 0
        %s357 = smul.addr %s356, 4
        %s358 = scalar_lea.vmem %s5, %s357
        %p359 = scmp.eq.s32.totalorder %s31, 0
        // Predicated region
        $region53: #{tpu_custom_call.1} parent=43 // pred_check
          %p360 = pneg %p359
        $region54: #{tpu_custom_call.1} parent=43 // pred_check_branch
          %362 = sbr.rel (%p360) target = $region56
        $region55: #{tpu_custom_call.1} parent=43 // pred_region
          %v363 = vld [vmem:[%s308] sm:$0xf]
          %vm364 = vcmask 60416
          %v365 = vsel %vm364, %v363, 0.0
          %366 = vadd.xlane.f32.xlu0 %v365
          %v367 = vpop.xlane.xlu0 %366
          %v368 = vrcp.pop 8.0
          %v369 = vmul.f32 8.0, %v368
          %v370 = vsub.f32 1.0, %v369
          %v371 = vmul.f32 %v368, %v370
          %v372 = vadd.f32 %v368, %v371
          %vm373 = vweird.f32 %v368
          %v374 = vsel %vm373, %v368, %v372
          %v375 = vmul.f32 %v367, %v374
          %v376 = vsub.f32 %v363, %v375
          %v377 = vmul.f32 %v376, %v376
          %v378 = vsel %vm364, %v377, 0.0
          %379 = vadd.xlane.f32.xlu0 %v378
          %v380 = vpop.xlane.xlu0 %379
          %v381 = vmul.f32 %v380, %v374
          %v382 = vadd.f32 %v381, 1e-05
          %v383 = vrsqrt.pop %v382
          %v384 = vmul.f32 %v383, %v382
          %v385 = vmul.f32 %v384, %v383
          %v386 = vmul.f32 0.5, %v385
          %v387 = vsub.f32 1.5, %v386
          %v388 = vmul.f32 %v383, %v387
          %vm389 = vweird.f32 %v382
          %vm390 = vweird.f32 %v383
          %vm391 = vmor %vm389, %vm390
          %v392 = vsel %vm391, %v383, %v388
          %v393 = vmul.f32 %v376, %v392
          %v394 = vld [vmem:[%s2] sm:$0x1]
          %v396 = vperm.slane %v394, 0
          %v398 = vmul.f32 %v393, %v396
          %v399 = vld [vmem:[%s3] sm:$0x1]
          %v401 = vperm.slane %v399, 0
          %v403 = vadd.f32 %v398, %v401
          %404 = vst.msk [vmem:[#allocation2] sm:$0xf] %vm364, %v403
        $region56: #{tpu_custom_call.1} parent=43 // pred_fallthru
          _
        %v405 = vld [vmem:[%s354] sm:$0xf]
        %v406 = vld [vmem:[#allocation2] sm:$0xf]
        %v407 = vld [vmem:[%s358] sm:$0xf]
        %409 = vset.pattern.permute.xlu0 0
        %410 = vperm.xlu0 %409, %v407
        %v411 = vpop.permute.xlu0 %410
        %vm413 = vcmask 31744
        %v415 = vsel %vm413, %v405, 0
        %vm417 = vcmask 1043456
        %v419 = vsel %vm417, %v406, 0
        %421 = vmatpush.msra.mxu0 0.0
        %422 = vmatpush.msra.mxu0 0.0
        %423 = vmatpush.msra.mxu0 0.0
        %424 = vmatpush.msra.mxu0 0.0
        %425 = vmatpush.msra.mxu0 0.0
        %426 = vmatpush.msra.mxu0 0.0
        %427 = vmatpush.msra.mxu0 0.0
        %428 = vmatpush.msra.mxu0 0.0
        %429 = vmatpush.msra.mxu0 0.0
        %430 = vmatpush.msra.mxu0 0.0
        %431 = vmatpush.msra.mxu0 0.0
        %432 = vmatpush.msra.mxu0 0.0
        %433 = vmatpush.msra.mxu0 0.0
        %434 = vmatpush.msra.mxu0 0.0
        %435 = vmatpush.msra.mxu0 0.0
        %436 = vmatpush.msra.mxu0 %v419
        %437 = vmatmul.f32.gmra.mxu0 %v415
        %v438 = vpop.f32.mrf.mxu0
        %v439 = vadd.f32 %v411, %v438
        %440 = vdwg.mxu0
        %v441 = vld [vmem:[%s298] sm:$0xf]
        %v442 = vmul.f32 %v441, %v439
        %vm443 = vcmask 60416
        %444 = vst.msk [vmem:[%s350] sm:$0xf] %vm443, %v442
        %s445 = sand.u32 %s196, 1
        %s446 = scalar_lea.sflag [#allocation5], %s445
        %s447 = sand.u32 %s196, 1
        %s448 = smul.addr %s447, 4
        %s449 = scalar_lea.vmem [#allocation8], %s448
        // Predicated region
        $region57: #{tpu_custom_call.1} parent=43 // pred_check
          %p450 = pneg %p206
        $region58: #{tpu_custom_call.1} parent=43 // pred_check_branch
          %452 = sbr.rel (%p450) target = $region60
        $region59: #{tpu_custom_call.1} parent=43 // pred_region
          %454 = vsyncadd %s446, 0
          %s455 = sadd.s32 %s31, %s30
          %s456 = smul.addr %s455, 4
          %s457 = scalar_lea.hbm %s6, %s456
          %s459 = sshll.u32 %s449, 4
          %s460 = int_to_ptr.vmem [resolvable:$true] %s459
          %s461 = sshll.u32 %s457, 4
          %s462 = int_to_ptr.hbm [resolvable:$true] %s461
          %464 = dma.vmem_to_hbm [thread:$0]  %s460, 64, %s462, %s446
        $region60: #{tpu_custom_call.1} parent=43 // pred_fallthru
          _
      $region44: #{tpu_custom_call.1} parent=5 // pred_fallthru
        _
      %p465 = scmp.le.s32.totalorder 2, %s21
      // Predicated region
      $region61: #{tpu_custom_call.1} parent=5 // pred_check
        %p466 = pneg %p465
      $region62: #{tpu_custom_call.1} parent=5 // pred_check_branch
        %468 = sbr.rel (%p466) target = $region64
      $region63: #{tpu_custom_call.1} parent=5 // pred_region
        %s469 = ssub.s32 %s21, 2
        // Predicated region
        $region65: #{tpu_custom_call.1} parent=63 // pred_check
          %p470 = pneg %p212
        $region66: #{tpu_custom_call.1} parent=63 // pred_check_branch
          %472 = sbr.rel (%p470) target = $region68
        $region67: #{tpu_custom_call.1} parent=63 // pred_region
          %s473 = sand.u32 %s197, 1
          %s474 = scalar_lea.sflag [#allocation5], %s473
          %s475 = sand.u32 %s197, 1
          %s476 = smul.addr %s475, 4
          %s477 = scalar_lea.vmem [#allocation8], %s476
          %479 = dma.done %s474, 64
        $region68: #{tpu_custom_call.1} parent=63 // pred_fallthru
          _
      $region64: #{tpu_custom_call.1} parent=5 // pred_fallthru
        _
    $region6: #{tpu_custom_call.1} parent=1 // loop_footer
      %s25 = sadd.s32 1, %s21
    $region7: #{tpu_custom_call.1} parent=1 // loop_footer_branch
      %20 = sbr.rel target = $region3
    $region8: #{tpu_custom_call.1} parent=1 // loop_exit
      _
    %480 = vsyncpa [#allocation4], 1
    %s481 = scalar_lea.sflag [#allocation4], 1
    %482 = vsyncpa %s481, 1
    %483 = vsyncpa [#allocation7], 1
    %s484 = scalar_lea.sflag [#allocation7], 1
    %485 = vsyncpa %s484, 1
    %486 = vsyncpa [#allocation5], 1
    %s487 = scalar_lea.sflag [#allocation5], 1
    %488 = vsyncpa %s487, 1

</llo_original>
